<compile_context>
chip_gen: v7x
topology: tpu7x:2x2x1
jax: 0.10.0
libtpu: 0.0.40
codegen_flags: <defaults>
</compile_context>

<pallas_src>
import functools
import numpy as np
import jax
import jax.numpy as jnp
from jax import random
from jax.experimental import pallas as pl
from jax.experimental.pallas import tpu as pltpu

NUM_CLASSES = 11
AUX_CLASSES = 21        # pretrained aux FCNHead keeps its original 21 classes
BN_EPS = 1e-5


def _round_up(x, m):
    return ((x + m - 1) // m) * m


def _pick_tile(p, candidates):
    if p <= candidates[0]:
        return p
    for t in candidates:
        if p % t == 0:
            return t
    return candidates[-1]


# --------------------------------------------------------------------------
# Fused matmul kernel: out = maybe_relu((x @ w) * scale + bias [+ residual])
# bf16 operands, f32 accumulation, k-innermost reduction grid axis.
# --------------------------------------------------------------------------
def _fused_mm_kernel(relu, has_res, *refs):
    if has_res:
        x_ref, w_ref, s_ref, b_ref, r_ref, o_ref, acc_ref = refs
    else:
        x_ref, w_ref, s_ref, b_ref, o_ref, acc_ref = refs
        r_ref = None

    @pl.when(pl.program_id(2) == 0)
    def _():
        acc_ref[...] = jnp.zeros_like(acc_ref)

    acc_ref[...] += jnp.dot(x_ref[...], w_ref[...],
                            preferred_element_type=jnp.float32)

    @pl.when(pl.program_id(2) == pl.num_programs(2) - 1)
    def _():
        y = acc_ref[...] * s_ref[...] + b_ref[...]
        if has_res:
            y = y + r_ref[...]
        if relu:
            y = jnp.maximum(y, 0.0)
        o_ref[...] = y


def fused_matmul(a, w, scale, bias, relu=False, residual=None, n_out=None):
    """a:[M,K] (any float) @ w:[Kw>=K aligned-ish, Np] bf16, scale/bias:[1,Np] f32."""
    M, K = a.shape
    Kw, Np = w.shape
    if n_out is None:
        n_out = Np
    Kp = _round_up(max(K, Kw), 128)
    tm = min(256, _round_up(M, 8))
    Mp = _round_up(M, tm)
    tk = _pick_tile(Kp, (512, 256, 128))
    tn = _pick_tile(Np, (256, 128))

    a_p = jnp.pad(a.astype(jnp.bfloat16), ((0, Mp - M), (0, Kp - K)))
    w_p = w if Kw == Kp else jnp.pad(w, ((0, Kp - Kw), (0, 0)))

    has_res = residual is not None
    inputs = [a_p, w_p, scale, bias]
    in_specs = [
        pl.BlockSpec((tm, tk), lambda i, j, k: (i, k)),
        pl.BlockSpec((tk, tn), lambda i, j, k: (k, j)),
        pl.BlockSpec((1, tn), lambda i, j, k: (0, j)),
        pl.BlockSpec((1, tn), lambda i, j, k: (0, j)),
    ]
    if has_res:
        r_p = jnp.pad(residual.astype(jnp.float32),
                      ((0, Mp - M), (0, Np - residual.shape[1])))
        inputs.append(r_p)
        in_specs.append(pl.BlockSpec((tm, tn), lambda i, j, k: (i, j)))

    grid = (Mp // tm, Np // tn, Kp // tk)
    out = pl.pallas_call(
        functools.partial(_fused_mm_kernel, relu, has_res),
        out_shape=jax.ShapeDtypeStruct((Mp, Np), jnp.float32),
        grid=grid,
        in_specs=in_specs,
        out_specs=pl.BlockSpec((tm, tn), lambda i, j, k: (i, j)),
        scratch_shapes=[pltpu.VMEM((tm, tn), jnp.float32)],
        compiler_params=pltpu.CompilerParams(
            dimension_semantics=("parallel", "parallel", "arbitrary"),
            vmem_limit_bytes=32 * 1024 * 1024),
    )(*inputs)
    return out[:M, :n_out]


# --------------------------------------------------------------------------
# Conv (bf16 im2col glue, static dead-tap elimination) + fused Pallas matmul
# --------------------------------------------------------------------------
def _contributing_taps(kh, kw, H, W, Ho, Wo, stride, padding, dilation):
    rows = [i for i in range(kh)
            if (Ho - 1) * stride + i * dilation - padding >= 0
            and i * dilation - padding <= H - 1]
    cols = [j for j in range(kw)
            if (Wo - 1) * stride + j * dilation - padding >= 0
            and j * dilation - padding <= W - 1]
    return [(i, j) for i in rows for j in cols]


@functools.partial(jax.jit, static_argnames=("meta", "stride", "padding",
                                             "dilation", "relu", "has_res"))
def _conv_bn_impl(x, w, s, b, res, *, meta, stride, padding, dilation, relu, has_res):
    kh, kw, cin, cout = meta
    N, H, W, _ = x.shape
    Ho = (H + 2 * padding - dilation * (kh - 1) - 1) // stride + 1
    Wo = (W + 2 * padding - dilation * (kw - 1) - 1) // stride + 1
    xb = x.astype(jnp.bfloat16)

    if kh == 1 and kw == 1:
        if stride != 1:
            xb = xb[:, ::stride, ::stride, :]
        a = xb.reshape(N * Ho * Wo, cin)
        w_use = w
    else:
        taps = _contributing_taps(kh, kw, H, W, Ho, Wo, stride, padding, dilation)
        xp = xb
        if padding:
            xp = jnp.pad(xb, ((0, 0), (padding, padding), (padding, padding), (0, 0)))
        cols = []
        for (i, j) in taps:
            cols.append(
                xp[:, i * dilation:i * dilation + (Ho - 1) * stride + 1:stride,
                   j * dilation:j * dilation + (Wo - 1) * stride + 1:stride, :])
        if len(cols) > 1:
            a = jnp.concatenate(cols, axis=-1).reshape(N * Ho * Wo, len(taps) * cin)
        else:
            a = cols[0].reshape(N * Ho * Wo, cin)
        if len(taps) == kh * kw:
            w_use = w
        else:
            # taps that only touch zero padding contribute nothing -> drop their rows
            w_use = jnp.concatenate(
                [w[(i * kw + j) * cin:(i * kw + j + 1) * cin] for (i, j) in taps], axis=0)

    resm = res.reshape(N * Ho * Wo, cout) if has_res else None
    out = fused_matmul(a, w_use, s, b, relu=relu, residual=resm, n_out=cout)
    return out.reshape(N, Ho, Wo, cout)


def conv_bn(x, pc, stride=1, padding=0, dilation=1, relu=True, residual=None):
    w, s, b, meta = pc
    has_res = residual is not None
    if residual is None:
        residual = jnp.zeros((1,), jnp.float32)   # unused dummy
    return _conv_bn_impl(x, w, s, b, residual, meta=meta, stride=stride,
                         padding=padding, dilation=dilation, relu=relu,
                         has_res=has_res)


# --------------------------------------------------------------------------
# Max pool 3x3 stride 2 pad 1 (tiled, pipelined)
# --------------------------------------------------------------------------
def _max_kernel(p_ref, o_ref):
    o_ref[...] = jnp.max(p_ref[...], axis=0)


@jax.jit
def maxpool_3x3_s2_p1(x):
    N, H, W, C = x.shape
    Ho = (H - 1) // 2 + 1
    Wo = (W - 1) // 2 + 1
    xp = jnp.pad(x, ((0, 0), (1, 1), (1, 1), (0, 0)), constant_values=-jnp.inf)
    taps = [xp[:, i:i + (Ho - 1) * 2 + 1:2, j:j + (Wo - 1) * 2 + 1:2, :]
            for i in range(3) for j in range(3)]
    M = N * Ho * Wo
    p = jnp.stack(taps, axis=0).reshape(9, M, C)
    tr = min(512, _round_up(M, 8))
    Mp = _round_up(M, tr)
    p = jnp.pad(p, ((0, 0), (0, Mp - M), (0, 0)))
    out = pl.pallas_call(
        _max_kernel,
        out_shape=jax.ShapeDtypeStruct((Mp, C), jnp.float32),
        grid=(Mp // tr,),
        in_specs=[pl.BlockSpec((9, tr, C), lambda r: (0, r, 0))],
        out_specs=pl.BlockSpec((tr, C), lambda r: (r, 0)),
        compiler_params=pltpu.CompilerParams(dimension_semantics=("parallel",)),
    )(p)
    return out[:M].reshape(N, Ho, Wo, C)


# --------------------------------------------------------------------------
# Global average pool (tiled row-sum reduction kernel)
# --------------------------------------------------------------------------
def _gap_kernel(inv_hw, x_ref, o_ref, acc_ref):
    @pl.when(pl.program_id(1) == 0)
    def _():
        acc_ref[...] = jnp.zeros_like(acc_ref)

    acc_ref[...] += jnp.sum(x_ref[0], axis=0, keepdims=True)

    @pl.when(pl.program_id(1) == pl.num_programs(1) - 1)
    def _():
        o_ref[0] = acc_ref[...] * inv_hw


@jax.jit
def global_avg_pool(x):
    N, H, W, C = x.shape
    HW = H * W
    tr = min(256, _round_up(HW, 8))
    HWp = _round_up(HW, tr)
    xr = jnp.pad(x.reshape(N, HW, C), ((0, 0), (0, HWp - HW), (0, 0)))
    out = pl.pallas_call(
        functools.partial(_gap_kernel, 1.0 / HW),
        out_shape=jax.ShapeDtypeStruct((N, 1, C), jnp.float32),
        grid=(N, HWp // tr),
        in_specs=[pl.BlockSpec((1, tr, C), lambda n, r: (n, r, 0))],
        out_specs=pl.BlockSpec((1, 1, C), lambda n, r: (n, 0, 0)),
        scratch_shapes=[pltpu.VMEM((1, C), jnp.float32)],
        compiler_params=pltpu.CompilerParams(
            dimension_semantics=("parallel", "arbitrary")),
    )(xr)
    return out.reshape(N, 1, 1, C)


def aspp_pooling(x, pc):
    """ASPPPooling: AdaptiveAvgPool2d(1) -> 1x1 conv+BN+ReLU -> broadcast back."""
    N, H, W, _ = x.shape
    pooled = global_avg_pool(x)
    p = conv_bn(pooled, pc, relu=True)
    return jnp.broadcast_to(p, (N, H, W, p.shape[-1]))   # bilinear of 1x1 = broadcast


# --------------------------------------------------------------------------
# Bilinear upsample (align_corners=False): single Pallas kernel per output row
# --------------------------------------------------------------------------
def _interp_matrix(out_size, in_size):
    """PyTorch bilinear (align_corners=False) interpolation weights as a matrix."""
    if in_size == 1:
        return np.ones((out_size, 1), dtype=np.float32)
    scale = in_size / out_size
    i = np.arange(out_size, dtype=np.float64)
    src = np.maximum(scale * (i + 0.5) - 0.5, 0.0)
    i0 = np.minimum(np.floor(src).astype(np.int64), in_size - 1)
    i1 = np.minimum(i0 + 1, in_size - 1)
    w1 = src - i0
    A = np.zeros((out_size, in_size), dtype=np.float32)
    np.add.at(A, (np.arange(out_size), i0), 1.0 - w1)
    np.add.at(A, (np.arange(out_size), i1), w1)
    return A


def _upsample_kernel(scale_h, h_in, x_ref, aw_ref, o_ref):
    i = pl.program_id(1)
    si = jnp.maximum(scale_h * (i.astype(jnp.float32) + 0.5) - 0.5, 0.0)
    i0f = jnp.minimum(jnp.floor(si), float(h_in - 1))
    i0 = i0f.astype(jnp.int32)
    i1 = jnp.minimum(i0 + 1, h_in - 1)
    t = si - i0f
    r0 = x_ref[0, pl.ds(i0, 1), :, :][0]          # [Wp, Cp]
    r1 = x_ref[0, pl.ds(i1, 1), :, :][0]
    row = (1.0 - t) * r0 + t * r1
    o_ref[0, 0] = jnp.dot(aw_ref[...], row, preferred_element_type=jnp.float32)


@functools.partial(jax.jit, static_argnames=("hout", "wout"))
def bilinear_upsample(x, hout, wout):
    """F.interpolate(mode='bilinear', align_corners=False) for NHWC input."""
    N, H, W, C = x.shape
    Cp = _round_up(C, 128)
    Wp = _round_up(W, 8)
    Wop = _round_up(wout, 8)
    xpad = jnp.pad(x.astype(jnp.float32),
                   ((0, 0), (0, 0), (0, Wp - W), (0, Cp - C)))
    aw_np = np.zeros((Wop, Wp), np.float32)
    aw_np[:wout, :W] = _interp_matrix(wout, W)
    aw = jnp.asarray(aw_np)
    out = pl.pallas_call(
        functools.partial(_upsample_kernel, H / hout, H),
        out_shape=jax.ShapeDtypeStruct((N, hout, Wop, Cp), jnp.float32),
        grid=(N, hout),
        in_specs=[pl.BlockSpec((1, H, Wp, Cp), lambda n, i: (n, 0, 0, 0)),
                  pl.BlockSpec((Wop, Wp), lambda n, i: (0, 0))],
        out_specs=pl.BlockSpec((1, 1, Wop, Cp), lambda n, i: (n, i, 0, 0)),
        compiler_params=pltpu.CompilerParams(
            dimension_semantics=("parallel", "arbitrary")),
    )(xpad, aw)
    return out[:, :, :wout, :C]


# --------------------------------------------------------------------------
# Deterministic parameters (shapes match deeplabv3_resnet101); weights are
# pre-flattened to (kh*kw*cin, cout), pre-padded to (128,128) multiples,
# pre-cast to bf16; BN is folded to per-channel f32 scale/bias.
# --------------------------------------------------------------------------
def _pack_conv(w, s, b, kh, kw, cin, cout):
    K = kh * kw * cin
    Kp = _round_up(K, 128)
    Np = _round_up(cout, 128)
    w_p = jnp.pad(w, ((0, Kp - K), (0, Np - cout))).astype(jnp.bfloat16)
    s_p = jnp.pad(s.reshape(1, cout).astype(jnp.float32), ((0, 0), (0, Np - cout)))
    b_p = jnp.pad(b.reshape(1, cout).astype(jnp.float32), ((0, 0), (0, Np - cout)))
    return (w_p, s_p, b_p, (kh, kw, cin, cout))


class ParamGen:
    def __init__(self, seed):
        self._key = random.PRNGKey(seed)

    def _next(self):
        self._key, k = random.split(self._key)
        return k

    def conv_bn(self, kh, kw, cin, cout):
        K = kh * kw * cin
        std = 0.5 * float(np.sqrt(2.0 / K))
        w = random.normal(self._next(), (K, cout), jnp.float32) * std
        s = jnp.full((cout,), 1.0 / float(np.sqrt(1.0 + BN_EPS)), jnp.float32)
        b = jnp.zeros((cout,), jnp.float32)
        return _pack_conv(w, s, b, kh, kw, cin, cout)

    def conv_bias(self, kh, kw, cin, cout):
        K = kh * kw * cin
        std = 0.5 * float(np.sqrt(2.0 / K))
        w = random.normal(self._next(), (K, cout), jnp.float32) * std
        bias = random.normal(self._next(), (cout,), jnp.float32) * 0.01
        return _pack_conv(w, jnp.ones((cout,), jnp.float32), bias, kh, kw, cin, cout)


def build_params(seed=1):
    pg = ParamGen(seed)
    P = {}
    P["stem"] = pg.conv_bn(7, 7, 3, 64)

    dilation_state = [1]

    def make_layer(inplanes, planes, blocks, stride, dilate):
        prev_dil = dilation_state[0]
        if dilate:
            dilation_state[0] *= stride
            stride = 1
        layer = []
        blk = {"c1": pg.conv_bn(1, 1, inplanes, planes),
               "c2": pg.conv_bn(3, 3, planes, planes),
               "c3": pg.conv_bn(1, 1, planes, planes * 4),
               "stride": stride, "dilation": prev_dil}
        if stride != 1 or inplanes != planes * 4:
            blk["down"] = pg.conv_bn(1, 1, inplanes, planes * 4)
        layer.append(blk)
        inplanes = planes * 4
        for _ in range(1, blocks):
            layer.append({"c1": pg.conv_bn(1, 1, inplanes, planes),
                          "c2": pg.conv_bn(3, 3, planes, planes),
                          "c3": pg.conv_bn(1, 1, planes, planes * 4),
                          "stride": 1, "dilation": dilation_state[0]})
        return layer, inplanes

    inp = 64
    P["layer1"], inp = make_layer(inp, 64, 3, 1, False)
    P["layer2"], inp = make_layer(inp, 128, 4, 2, False)
    P["layer3"], inp = make_layer(inp, 256, 23, 2, True)   # replace_stride_with_dilation
    P["layer4"], inp = make_layer(inp, 512, 3, 2, True)

    # ASPP(2048, [12, 24, 36]) + DeepLabHead
    P["aspp0"] = pg.conv_bn(1, 1, 2048, 256)
    P["aspp1"] = pg.conv_bn(3, 3, 2048, 256)
    P["aspp2"] = pg.conv_bn(3, 3, 2048, 256)
    P["aspp3"] = pg.conv_bn(3, 3, 2048, 256)
    P["aspp_pool"] = pg.conv_bn(1, 1, 2048, 256)
    P["aspp_proj"] = pg.conv_bn(1, 1, 1280, 256)
    P["head_conv"] = pg.conv_bn(3, 3, 256, 256)
    P["head_cls"] = pg.conv_bias(1, 1, 256, NUM_CLASSES)   # replaced classifier[4]
    # aux FCNHead(1024, 21)
    P["aux_conv"] = pg.conv_bn(3, 3, 1024, 256)
    P["aux_cls"] = pg.conv_bias(1, 1, 256, AUX_CLASSES)
    return P


# --------------------------------------------------------------------------
# Forward pass
# --------------------------------------------------------------------------
def bottleneck_fwd(x, blk):
    if "down" in blk:
        identity = conv_bn(x, blk["down"], stride=blk["stride"], relu=False)
    else:
        identity = x
    out = conv_bn(x, blk["c1"], relu=True)
    out = conv_bn(out, blk["c2"], stride=blk["stride"], padding=blk["dilation"],
                  dilation=blk["dilation"], relu=True)
    # residual add + ReLU fused into the c3 matmul epilogue
    out = conv_bn(out, blk["c3"], relu=True, residual=identity)
    return out


def deeplabv3_forward(x_nchw, P):
    n, _, H, W = x_nchw.shape
    x = jnp.transpose(x_nchw, (0, 2, 3, 1)).astype(jnp.float32)   # NCHW -> NHWC

    h = conv_bn(x, P["stem"], stride=2, padding=3, relu=True)
    h = maxpool_3x3_s2_p1(h)
    for blk in P["layer1"]:
        h = bottleneck_fwd(h, blk)
    for blk in P["layer2"]:
        h = bottleneck_fwd(h, blk)
    for blk in P["layer3"]:
        h = bottleneck_fwd(h, blk)
    aux_feat = h                                   # backbone 'aux' (layer3)
    for blk in P["layer4"]:
        h = bottleneck_fwd(h, blk)                 # backbone 'out' (layer4)

    # --- DeepLabHead: ASPP -> 3x3 conv -> 1x1 classifier ---
    b0 = conv_bn(h, P["aspp0"], relu=True)
    b1 = conv_bn(h, P["aspp1"], padding=12, dilation=12, relu=True)
    b2 = conv_bn(h, P["aspp2"], padding=24, dilation=24, relu=True)
    b3 = conv_bn(h, P["aspp3"], padding=36, dilation=36, relu=True)
    b4 = aspp_pooling(h, P["aspp_pool"])
    cat = jnp.concatenate([b0, b1, b2, b3, b4], axis=-1)
    proj = conv_bn(cat, P["aspp_proj"], relu=True)
    # TODO(synk): Dropout(0.5) / Dropout(0.1) are identity in eval mode; not applied.
    hc = conv_bn(proj, P["head_conv"], padding=1, relu=True)
    logits = conv_bn(hc, P["head_cls"], relu=False)
    out = bilinear_upsample(logits, H, W)

    # --- aux FCNHead ---
    a = conv_bn(aux_feat, P["aux_conv"], padding=1, relu=True)
    a = conv_bn(a, P["aux_cls"], relu=False)
    aux = bilinear_upsample(a, H, W)

    return {"out": jnp.transpose(out, (0, 3, 1, 2)),   # back to NCHW
            "aux": jnp.transpose(aux, (0, 3, 1, 2))}


if __name__ == "__main__":
    params = build_params(seed=1)
    x = random.normal(random.PRNGKey(0), (2, 3, 32, 32), dtype=jnp.float32)
    result = deeplabv3_forward(x, params)
    jax.block_until_ready(result["out"])
    jax.block_until_ready(result["aux"])
    assert result["out"].shape == (2, NUM_CLASSES, 32, 32)
    assert result["aux"].shape == (2, AUX_CLASSES, 32, 32)
    assert bool(jnp.all(jnp.isfinite(result["out"])))
    assert bool(jnp.all(jnp.isfinite(result["aux"])))
    print("KERNEL_OK")
</pallas_src>

<mosaic_0001>
module attributes {stable_mosaic.version = 11 : i64} {
  func.func @_fused_mm_kernel(%arg0: i32, %arg1: i32, %arg2: i32, %arg3: memref<256x256xbf16, #tpu.memory_space<vmem>>, %arg4: memref<256x128xbf16, #tpu.memory_space<vmem>>, %arg5: memref<1x128xf32, #tpu.memory_space<vmem>>, %arg6: memref<1x128xf32, #tpu.memory_space<vmem>>, %arg7: memref<256x128xf32, #tpu.memory_space<vmem>>, %arg8: memref<256x128xf32, #tpu.memory_space<vmem>>) attributes {dimension_semantics = [#tpu.dimension_semantics<parallel>, #tpu.dimension_semantics<parallel>, #tpu.dimension_semantics<arbitrary>], iteration_bounds = array<i64: 2, 1, 1>, scalar_prefetch = 0 : i64, scratch_operands = 1 : i64, tpu.core_type = #tpu.core_type<tc>, window_params = [{transform_indices = @transform_0, window_bounds = array<i64: 256, 256>}, {transform_indices = @transform_1, window_bounds = array<i64: 256, 128>}, {transform_indices = @transform_2, window_bounds = array<i64: 1, 128>}, {transform_indices = @transform_3, window_bounds = array<i64: 1, 128>}, {transform_indices = @transform_4, window_bounds = array<i64: 256, 128>}]} {
    %c0_i32 = arith.constant 0 : i32
    %0 = arith.cmpi eq, %arg2, %c0_i32 : i32
    %1 = arith.extui %0 : i1 to i32
    %c0_i32_0 = arith.constant 0 : i32
    %2 = arith.cmpi ne, %1, %c0_i32_0 : i32
    scf.if %2 {
      %cst_10 = arith.constant 0.000000e+00 : f32
      %12 = vector.broadcast %cst_10 : f32 to vector<256x128xf32>
      %c0_11 = arith.constant 0 : index
      %c0_12 = arith.constant 0 : index
      %13 = vector.load %arg8[%c0_11, %c0_12] : memref<256x128xf32, #tpu.memory_space<vmem>>, vector<256x128xf32>
      tpu.vector_store %arg8[%c0_11, %c0_12], %12 {strides = array<i32>} : memref<256x128xf32, #tpu.memory_space<vmem>>, vector<256x128xf32>,
    } else {
    }
    %c0 = arith.constant 0 : index
    %c0_1 = arith.constant 0 : index
    %3 = vector.load %arg8[%c0, %c0_1] : memref<256x128xf32, #tpu.memory_space<vmem>>, vector<256x128xf32>
    %c0_2 = arith.constant 0 : index
    %c0_3 = arith.constant 0 : index
    %4 = vector.load %arg3[%c0_2, %c0_3] : memref<256x256xbf16, #tpu.memory_space<vmem>>, vector<256x256xbf16>
    %c0_4 = arith.constant 0 : index
    %c0_5 = arith.constant 0 : index
    %5 = vector.load %arg4[%c0_4, %c0_5] : memref<256x128xbf16, #tpu.memory_space<vmem>>, vector<256x128xbf16>
    %cst = arith.constant dense<0.000000e+00> : vector<256x128xf32>
    %6 = tpu.matmul %4, %5, %cst {dimension_numbers = #tpu.dot_dimension_numbers<[1], [0], [0], [1], [0, 0, 1, 1], [], []>} : vector<256x256xbf16>, vector<256x128xbf16>, vector<256x128xf32> -> vector<256x128xf32>
    %7 = arith.addf %3, %6 : vector<256x128xf32>
    %c0_6 = arith.constant 0 : index
    %c0_7 = arith.constant 0 : index
    %8 = vector.load %arg8[%c0_6, %c0_7] : memref<256x128xf32, #tpu.memory_space<vmem>>, vector<256x128xf32>
    tpu.vector_store %arg8[%c0_6, %c0_7], %7 {strides = array<i32>} : memref<256x128xf32, #tpu.memory_space<vmem>>, vector<256x128xf32>,
    %c0_i32_8 = arith.constant 0 : i32
    %9 = arith.cmpi eq, %arg2, %c0_i32_8 : i32
    %10 = arith.extui %9 : i1 to i32
    %c0_i32_9 = arith.constant 0 : i32
    %11 = arith.cmpi ne, %10, %c0_i32_9 : i32
    scf.if %11 {
      %c0_10 = arith.constant 0 : index
      %c0_11 = arith.constant 0 : index
      %12 = vector.load %arg8[%c0_10, %c0_11] : memref<256x128xf32, #tpu.memory_space<vmem>>, vector<256x128xf32>
      %c0_12 = arith.constant 0 : index
      %c0_13 = arith.constant 0 : index
      %13 = vector.load %arg5[%c0_12, %c0_13] : memref<1x128xf32, #tpu.memory_space<vmem>>, vector<1x128xf32>
      %14 = vector.broadcast %13 : vector<1x128xf32> to vector<256x128xf32>
      %15 = arith.mulf %12, %14 : vector<256x128xf32>
      %c0_14 = arith.constant 0 : index
      %c0_15 = arith.constant 0 : index
      %16 = vector.load %arg6[%c0_14, %c0_15] : memref<1x128xf32, #tpu.memory_space<vmem>>, vector<1x128xf32>
      %17 = vector.broadcast %16 : vector<1x128xf32> to vector<256x128xf32>
      %18 = arith.addf %15, %17 : vector<256x128xf32>
      %cst_16 = arith.constant 0.000000e+00 : f32
      %19 = vector.broadcast %cst_16 : f32 to vector<256x128xf32>
      %20 = arith.maximumf %18, %19 : vector<256x128xf32>
      %c0_17 = arith.constant 0 : index
      %c0_18 = arith.constant 0 : index
      %21 = vector.load %arg7[%c0_17, %c0_18] : memref<256x128xf32, #tpu.memory_space<vmem>>, vector<256x128xf32>
      tpu.vector_store %arg7[%c0_17, %c0_18], %20 {strides = array<i32>} : memref<256x128xf32, #tpu.memory_space<vmem>>, vector<256x128xf32>,
    } else {
    }
    return
  }
  func.func @transform_0(%arg0: i32, %arg1: i32, %arg2: i32) -> (i32, i32) {
    %c0_i32 = arith.constant 0 : i32
    return %arg0, %arg2 : i32, i32
  }
  func.func @transform_1(%arg0: i32, %arg1: i32, %arg2: i32) -> (i32, i32) {
    %c0_i32 = arith.constant 0 : i32
    return %arg2, %arg1 : i32, i32
  }
  func.func @transform_2(%arg0: i32, %arg1: i32, %arg2: i32) -> (i32, i32) {
    %c0_i32 = arith.constant 0 : i32
    %c0_i32_0 = arith.constant 0 : i32
    return %c0_i32, %arg1 : i32, i32
  }
  func.func @transform_3(%arg0: i32, %arg1: i32, %arg2: i32) -> (i32, i32) {
    %c0_i32 = arith.constant 0 : i32
    %c0_i32_0 = arith.constant 0 : i32
    return %c0_i32, %arg1 : i32, i32
  }
  func.func @transform_4(%arg0: i32, %arg1: i32, %arg2: i32) -> (i32, i32) {
    %c0_i32 = arith.constant 0 : i32
    return %arg0, %arg1 : i32, i32
  }
}

</mosaic_0001>

<llo_original>
// kernel: _conv_bn_impl.1
$region0: #{_conv_bn_impl.1}
  #allocation0 [shape = 'u32[]', space=smem, size = 0x4, offset = 0x4, fixed_abs, tag = 'smem constant byte address 0x4 - core index']
  #allocation1 [shape = 'u32[144,128]{1,0:T(1,128)}', space=vmem, size = 0x12000, scoped, tag = 'internal scratch']
  #allocation2 [shape = 'f32[256,128]{1,0:T(8,128)}', space=vmem, size = 0x20000, scoped, tag = 'scratch operand']
  %s0 = inlined_call_operand.vmem [shape: bf16[512,256], index: 0, kind: input, shape index: {}]
  %s1 = inlined_call_operand.vmem [shape: bf16[256,128], index: 1, kind: input, shape index: {}]
  %s2 = inlined_call_operand.vmem [shape: f32[1,128], index: 2, kind: input, shape index: {}]
  %s3 = inlined_call_operand.vmem [shape: f32[1,128], index: 3, kind: input, shape index: {}]
  %s4 = inlined_call_operand.hbm [shape: f32[512,128], index: 4, kind: output, shape index: {}]
  %s5 = sld [smem:[#allocation0]]
  $region57: #{_conv_bn_impl.1} parent=0
    _
  %s7 = ssub.s32 1, %s5
  %s8 = scalar_select 0, %s7, %s5
  $region1: #{_conv_bn_impl.1} parent=0
    #allocation3 [shape = 'u8[262144]{0}', space=vmem, size = 0x40000, scoped, tag = 'output window, operand 0']
    #allocation4 [shape = 's32[2]{0}', space=sflag, size = 0x8, scoped, tag = 'scoped memory for _conv_bn_impl.1']
    %9 = vsyncpa [#allocation4], 0
    %s10 = scalar_lea.sflag [#allocation4], 1
    %11 = vsyncpa %s10, 0
    loop: start=0, step=1, limit=4
    $region2: #{_conv_bn_impl.1} parent=1 // loop_pre_header
      _
    $region3: #{_conv_bn_impl.1} parent=1 // loop_header
      %s13 = sphi 0, %s17
      %p14 = scmp.ge.s32.totalorder %s13, 4
      %s20 = sphi 0, %s39
      %s21 = sphi 0, %s35
      %s22 = sphi 0, %s31
      %s23 = sphi 0, %s20
      %s24 = sphi 0, %s21
      %s25 = sphi 0, %s22
      %s26 = sphi 0, %s23
      %s27 = sphi 0, %s24
      %s28 = sphi 0, %s25
      %s44 = sphi 0, %s46
      %s47 = sphi 0, %s44
      %s48 = sphi 0, %s47
      %s64 = sphi 0, %s48
      %s72 = sphi 0, %s74
      %s75 = sphi 0, %s72
      %s76 = sphi 0, %s75
      %s92 = sphi 0, %s76
      %s98 = sphi 0, %s100
      %s101 = sphi 0, %s98
      %s102 = sphi 0, %s101
      %s118 = sphi 0, %s102
      %s124 = sphi 0, %s126
      %s127 = sphi 0, %s124
      %s128 = sphi 0, %s127
      %s144 = sphi 0, %s128
      %s152 = sphi 0, %s154
      %s155 = sphi 0, %s152
      %s156 = sphi 0, %s155
      %s172 = sphi 0, %s156
    $region4: #{_conv_bn_impl.1} parent=1 // loop_header_branch
      %16 = sbr.rel (%p14) target = $region8
    $region5: #{_conv_bn_impl.1} parent=1 // loop_body
      %s18 = ssub.s32 %s13, 1
      %s19 = ssub.s32 %s13, 2
      %s29 = sadd.s32 1, %s22
      %p30 = scmp.ge.s32.totalorder %s29, 1
      %s31 = scalar_select %p30, 0, %s29
      %s32 = sadd.s32 1, %s21
      %s33 = scalar_select %p30, %s32, %s21
      %p34 = scmp.ge.s32.totalorder %s33, 1
      %s35 = scalar_select %p34, 0, %s33
      %s36 = sadd.s32 1, %s20
      %s37 = scalar_select %p34, %s36, %s20
      %p38 = scmp.ge.s32.totalorder %s37, 2
      %s39 = scalar_select %p38, 0, %s37
      %s40 = ssub.s32 %s20, %s39
      %s41 = ssub.s32 %s22, %s31
      %s42 = sor.u32 %s40, %s41
      %p43 = scmp.eq.s32.totalorder %s42, 0
      %s45 = sadd.s32 %s44, 1
      %s46 = scalar_select %p43, %s44, %s45
      %p49 = pneg %p43
      %p50 = scmp.eq.s32.totalorder %s13, 1
      %p51 = por %p49, %p50
      %p52 = scmp.ne.s32.totalorder %s44, %s47
      %p53 = scmp.eq.s32.totalorder %s13, 0
      %p54 = por %p52, %p53
      %p55 = scmp.ne.s32.totalorder %s44, %s47
      %p56 = scmp.eq.s32.totalorder %s18, 1
      %p57 = por %p55, %p56
      %p58 = scmp.ne.s32.totalorder %s47, %s48
      %p59 = scmp.eq.s32.totalorder %s18, 0
      %p60 = por %p58, %p59
      %p61 = scmp.ne.s32.totalorder %s47, %s48
      %p62 = scmp.eq.s32.totalorder %s19, 1
      %p63 = por %p61, %p62
      %p65 = scmp.ne.s32.totalorder %s48, %s64
      %p66 = scmp.eq.s32.totalorder %s19, 0
      %p67 = por %p65, %p66
      %s68 = ssub.s32 %s22, %s31
      %s69 = ssub.s32 %s21, %s35
      %s70 = sor.u32 %s68, %s69
      %p71 = scmp.eq.s32.totalorder %s70, 0
      %s73 = sadd.s32 %s72, 1
      %s74 = scalar_select %p71, %s72, %s73
      %p77 = pneg %p71
      %p78 = scmp.eq.s32.totalorder %s13, 1
      %p79 = por %p77, %p78
      %p80 = scmp.ne.s32.totalorder %s72, %s75
      %p81 = scmp.eq.s32.totalorder %s13, 0
      %p82 = por %p80, %p81
      %p83 = scmp.ne.s32.totalorder %s72, %s75
      %p84 = scmp.eq.s32.totalorder %s18, 1
      %p85 = por %p83, %p84
      %p86 = scmp.ne.s32.totalorder %s75, %s76
      %p87 = scmp.eq.s32.totalorder %s18, 0
      %p88 = por %p86, %p87
      %p89 = scmp.ne.s32.totalorder %s75, %s76
      %p90 = scmp.eq.s32.totalorder %s19, 1
      %p91 = por %p89, %p90
      %p93 = scmp.ne.s32.totalorder %s76, %s92
      %p94 = scmp.eq.s32.totalorder %s19, 0
      %p95 = por %p93, %p94
      %s96 = ssub.s32 %s21, %s35
      %p97 = scmp.eq.s32.totalorder %s96, 0
      %s99 = sadd.s32 %s98, 1
      %s100 = scalar_select %p97, %s98, %s99
      %p103 = pneg %p97
      %p104 = scmp.eq.s32.totalorder %s13, 1
      %p105 = por %p103, %p104
      %p106 = scmp.ne.s32.totalorder %s98, %s101
      %p107 = scmp.eq.s32.totalorder %s13, 0
      %p108 = por %p106, %p107
      %p109 = scmp.ne.s32.totalorder %s98, %s101
      %p110 = scmp.eq.s32.totalorder %s18, 1
      %p111 = por %p109, %p110
      %p112 = scmp.ne.s32.totalorder %s101, %s102
      %p113 = scmp.eq.s32.totalorder %s18, 0
      %p114 = por %p112, %p113
      %p115 = scmp.ne.s32.totalorder %s101, %s102
      %p116 = scmp.eq.s32.totalorder %s19, 1
      %p117 = por %p115, %p116
      %p119 = scmp.ne.s32.totalorder %s102, %s118
      %p120 = scmp.eq.s32.totalorder %s19, 0
      %p121 = por %p119, %p120
      %s122 = ssub.s32 %s21, %s35
      %p123 = scmp.eq.s32.totalorder %s122, 0
      %s125 = sadd.s32 %s124, 1
      %s126 = scalar_select %p123, %s124, %s125
      %p129 = pneg %p123
      %p130 = scmp.eq.s32.totalorder %s13, 1
      %p131 = por %p129, %p130
      %p132 = scmp.ne.s32.totalorder %s124, %s127
      %p133 = scmp.eq.s32.totalorder %s13, 0
      %p134 = por %p132, %p133
      %p135 = scmp.ne.s32.totalorder %s124, %s127
      %p136 = scmp.eq.s32.totalorder %s18, 1
      %p137 = por %p135, %p136
      %p138 = scmp.ne.s32.totalorder %s127, %s128
      %p139 = scmp.eq.s32.totalorder %s18, 0
      %p140 = por %p138, %p139
      %p141 = scmp.ne.s32.totalorder %s127, %s128
      %p142 = scmp.eq.s32.totalorder %s19, 1
      %p143 = por %p141, %p142
      %p145 = scmp.ne.s32.totalorder %s128, %s144
      %p146 = scmp.eq.s32.totalorder %s19, 0
      %p147 = por %p145, %p146
      %s148 = ssub.s32 %s20, %s39
      %s149 = ssub.s32 %s21, %s35
      %s150 = sor.u32 %s148, %s149
      %p151 = scmp.eq.s32.totalorder %s150, 0
      %s153 = sadd.s32 %s152, 1
      %s154 = scalar_select %p151, %s152, %s153
      %p157 = pneg %p151
      %p158 = scmp.eq.s32.totalorder %s13, 1
      %p159 = por %p157, %p158
      %p160 = scmp.ne.s32.totalorder %s152, %s155
      %p161 = scmp.eq.s32.totalorder %s13, 0
      %p162 = por %p160, %p161
      %p163 = scmp.ne.s32.totalorder %s152, %s155
      %p164 = scmp.eq.s32.totalorder %s18, 1
      %p165 = por %p163, %p164
      %p166 = scmp.ne.s32.totalorder %s155, %s156
      %p167 = scmp.eq.s32.totalorder %s18, 0
      %p168 = por %p166, %p167
      %p169 = scmp.ne.s32.totalorder %s155, %s156
      %p170 = scmp.eq.s32.totalorder %s19, 1
      %p171 = por %p169, %p170
      %p173 = scmp.ne.s32.totalorder %s156, %s172
      %p174 = scmp.eq.s32.totalorder %s19, 0
      %p175 = por %p173, %p174
      %p176 = scmp.le.s32.totalorder 1, %s13
      %p177 = scmp.lt.s32.totalorder %s13, 3
      %p178 = pnand %p176, %p177
      %p179 = pneg %p178
      // Predicated region
      $region9: #{_conv_bn_impl.1} parent=5 // pred_check
        _
      $region10: #{_conv_bn_impl.1} parent=5 // pred_check_branch
        %181 = sbr.rel (%p178) target = $region12
      $region11: #{_conv_bn_impl.1} parent=5 // pred_region
        %s182 = ssub.s32 %s13, 1
        // Predicated region
        $region13: #{_conv_bn_impl.1} parent=11 // pred_check
          %p183 = pneg %p88
        $region14: #{_conv_bn_impl.1} parent=11 // pred_check_branch
          %185 = sbr.rel (%p183) target = $region16
        $region15: #{_conv_bn_impl.1} parent=11 // pred_region
          %s186 = smul.u32 32, %s25
          %p187 = scmp.lt.s32.totalorder %s186, 31
          %s188 = scalar_select %p187, %s186, 31
          %p189 = scmp.lt.s32.totalorder %s24, 0
          %s190 = scalar_select %p189, %s24, 0
          %s191 = sadd.s32 %s190, %s188
          %s192 = smul.addr %s191, 4
          %s193 = scalar_lea.vmem %s1, %s192
          %s194 = smul.u32 32, %s25
        $region16: #{_conv_bn_impl.1} parent=11 // pred_fallthru
          _
        // Predicated region
        $region17: #{_conv_bn_impl.1} parent=11 // pred_check
          %p195 = pneg %p114
        $region18: #{_conv_bn_impl.1} parent=11 // pred_check_branch
          %197 = sbr.rel (%p195) target = $region20
        $region19: #{_conv_bn_impl.1} parent=11 // pred_region
          %p198 = scmp.lt.s32.totalorder %s24, 0
          %s199 = scalar_select %p198, %s24, 0
          %s200 = scalar_lea.vmem %s2, %s199
        $region20: #{_conv_bn_impl.1} parent=11 // pred_fallthru
          _
        // Predicated region
        $region21: #{_conv_bn_impl.1} parent=11 // pred_check
          %p201 = pneg %p140
        $region22: #{_conv_bn_impl.1} parent=11 // pred_check_branch
          %203 = sbr.rel (%p201) target = $region24
        $region23: #{_conv_bn_impl.1} parent=11 // pred_region
          %p204 = scmp.lt.s32.totalorder %s24, 0
          %s205 = scalar_select %p204, %s24, 0
          %s206 = scalar_lea.vmem %s3, %s205
        $region24: #{_conv_bn_impl.1} parent=11 // pred_fallthru
          _
      $region12: #{_conv_bn_impl.1} parent=5 // pred_fallthru
        _
      %p207 = scmp.lt.s32.totalorder %s13, 2
      // Predicated region
      $region25: #{_conv_bn_impl.1} parent=5 // pred_check
        %p208 = pneg %p207
      $region26: #{_conv_bn_impl.1} parent=5 // pred_check_branch
        %210 = sbr.rel (%p208) target = $region28
      $region27: #{_conv_bn_impl.1} parent=5 // pred_region
        // Predicated region
        $region29: #{_conv_bn_impl.1} parent=27 // pred_check
          %p211 = pneg %p54
        $region30: #{_conv_bn_impl.1} parent=27 // pred_check_branch
          %213 = sbr.rel (%p211) target = $region32
        $region31: #{_conv_bn_impl.1} parent=27 // pred_region
          %s214 = smul.u32 32, %s20
          %s215 = smul.u32 2, %s22
          %p216 = scmp.lt.s32.totalorder %s214, 63
          %s217 = scalar_select %p216, %s214, 63
          %p218 = scmp.lt.s32.totalorder %s215, 1
          %s219 = scalar_select %p218, %s215, 1
          %s220 = smul.addr %s217, 2
          %s221 = sadd.s32 %s219, %s220
          %s222 = smul.addr %s221, 4
          %s223 = scalar_lea.vmem %s0, %s222
          %s224 = smul.u32 32, %s20
          %s225 = smul.u32 2, %s22
        $region32: #{_conv_bn_impl.1} parent=27 // pred_fallthru
          _
      $region28: #{_conv_bn_impl.1} parent=5 // pred_fallthru
        _
      %p226 = scmp.le.s32.totalorder 1, %s13
      %p227 = scmp.lt.s32.totalorder %s13, 3
      %p228 = pnand %p226, %p227
      %p229 = pneg %p228
      // Predicated region
      $region33: #{_conv_bn_impl.1} parent=5 // pred_check
        _
      $region34: #{_conv_bn_impl.1} parent=5 // pred_check_branch
        %231 = sbr.rel (%p228) target = $region36
      $region35: #{_conv_bn_impl.1} parent=5 // pred_region
        %s232 = ssub.s32 %s13, 1
        %s233 = smul.u32 32, %s23
        %s234 = smul.u32 2, %s25
        %p235 = scmp.lt.s32.totalorder %s233, 63
        %s236 = scalar_select %p235, %s233, 63
        %p237 = scmp.lt.s32.totalorder %s234, 1
        %s238 = scalar_select %p237, %s234, 1
        %s239 = smul.addr %s236, 2
        %s240 = sadd.s32 %s238, %s239
        %s241 = smul.addr %s240, 4
        %s242 = scalar_lea.vmem %s0, %s241
        %p243 = pneg %p60
        %p244 = pneg %p57
        %s245 = smul.u32 32, %s25
        %p246 = scmp.lt.s32.totalorder %s245, 31
        %s247 = scalar_select %p246, %s245, 31
        %p248 = scmp.lt.s32.totalorder %s24, 0
        %s249 = scalar_select %p248, %s24, 0
        %s250 = sadd.s32 %s249, %s247
        %s251 = smul.addr %s250, 4
        %s252 = scalar_lea.vmem %s1, %s251
        %p253 = pneg %p88
        %p254 = pneg %p85
        %p255 = scmp.lt.s32.totalorder %s24, 0
        %s256 = scalar_select %p255, %s24, 0
        %s257 = scalar_lea.vmem %s2, %s256
        %p258 = pneg %p114
        %p259 = pneg %p111
        %p260 = scmp.lt.s32.totalorder %s24, 0
        %s261 = scalar_select %p260, %s24, 0
        %s262 = scalar_lea.vmem %s3, %s261
        %p263 = pneg %p140
        %p264 = pneg %p137
        %p265 = pneg %p168
        %p266 = pneg %p165
        %s267 = sand.u32 %s155, 1
        %s268 = scalar_lea.sflag [#allocation4], %s267
        %s269 = sand.u32 %s155, 1
        %s270 = smul.addr %s269, 256
        %s271 = scalar_lea.vmem [#allocation3], %s270
        %s272 = smul.u32 32, %s23
        %s273 = smul.u32 2, %s25
        %p274 = scmp.lt.s32.totalorder %s272, 63
        %s275 = scalar_select %p274, %s272, 63
        %p276 = scmp.lt.s32.totalorder %s273, 1
        %s277 = scalar_select %p276, %s273, 1
        %s278 = smul.addr %s275, 2
        %s279 = sadd.s32 %s277, %s278
        %s280 = smul.addr %s279, 4
        %s281 = scalar_lea.vmem %s0, %s280
        %s282 = smul.u32 32, %s23
        %s283 = smul.u32 2, %s25
        %s284 = smul.u32 32, %s25
        %p285 = scmp.lt.s32.totalorder %s284, 31
        %s286 = scalar_select %p285, %s284, 31
        %p287 = scmp.lt.s32.totalorder %s24, 0
        %s288 = scalar_select %p287, %s24, 0
        %s289 = sadd.s32 %s288, %s286
        %s290 = smul.addr %s289, 4
        %s291 = scalar_lea.vmem %s1, %s290
        %s292 = smul.u32 32, %s25
        %p293 = scmp.lt.s32.totalorder %s24, 0
        %s294 = scalar_select %p293, %s24, 0
        %s295 = scalar_lea.vmem %s2, %s294
        %p296 = scmp.lt.s32.totalorder %s24, 0
        %s297 = scalar_select %p296, %s24, 0
        %s298 = scalar_lea.vmem %s3, %s297
        %s299 = smul.u32 32, %s23
        %p301 = scmp.eq.s32.totalorder %s25, 0
        // Predicated region
        $region37: #{_conv_bn_impl.1} parent=35 // pred_check
          %p302 = pneg %p301
        $region38: #{_conv_bn_impl.1} parent=35 // pred_check_branch
          %304 = sbr.rel (%p302) target = $region40
        $region39: #{_conv_bn_impl.1} parent=35 // pred_region
          %305 = vst [vmem:[#allocation2] sm:$0xff] 0.0
          %306 = vst [vmem:[#allocation2 + $0x8] sm:$0xff] 0.0
          %307 = vst [vmem:[#allocation2 + $0x10] sm:$0xff] 0.0
          %308 = vst [vmem:[#allocation2 + $0x18] sm:$0xff] 0.0
          %309 = vst [vmem:[#allocation2 + $0x20] sm:$0xff] 0.0
          %310 = vst [vmem:[#allocation2 + $0x28] sm:$0xff] 0.0
          %311 = vst [vmem:[#allocation2 + $0x30] sm:$0xff] 0.0
          %312 = vst [vmem:[#allocation2 + $0x38] sm:$0xff] 0.0
          %313 = vst [vmem:[#allocation2 + $0x40] sm:$0xff] 0.0
          %314 = vst [vmem:[#allocation2 + $0x48] sm:$0xff] 0.0
          %315 = vst [vmem:[#allocation2 + $0x50] sm:$0xff] 0.0
          %316 = vst [vmem:[#allocation2 + $0x58] sm:$0xff] 0.0
          %317 = vst [vmem:[#allocation2 + $0x60] sm:$0xff] 0.0
          %318 = vst [vmem:[#allocation2 + $0x68] sm:$0xff] 0.0
          %319 = vst [vmem:[#allocation2 + $0x70] sm:$0xff] 0.0
          %320 = vst [vmem:[#allocation2 + $0x78] sm:$0xff] 0.0
          %321 = vst [vmem:[#allocation2 + $0x80] sm:$0xff] 0.0
          %322 = vst [vmem:[#allocation2 + $0x88] sm:$0xff] 0.0
          %323 = vst [vmem:[#allocation2 + $0x90] sm:$0xff] 0.0
          %324 = vst [vmem:[#allocation2 + $0x98] sm:$0xff] 0.0
          %325 = vst [vmem:[#allocation2 + $0xa0] sm:$0xff] 0.0
          %326 = vst [vmem:[#allocation2 + $0xa8] sm:$0xff] 0.0
          %327 = vst [vmem:[#allocation2 + $0xb0] sm:$0xff] 0.0
          %328 = vst [vmem:[#allocation2 + $0xb8] sm:$0xff] 0.0
          %329 = vst [vmem:[#allocation2 + $0xc0] sm:$0xff] 0.0
          %330 = vst [vmem:[#allocation2 + $0xc8] sm:$0xff] 0.0
          %331 = vst [vmem:[#allocation2 + $0xd0] sm:$0xff] 0.0
          %332 = vst [vmem:[#allocation2 + $0xd8] sm:$0xff] 0.0
          %333 = vst [vmem:[#allocation2 + $0xe0] sm:$0xff] 0.0
          %334 = vst [vmem:[#allocation2 + $0xe8] sm:$0xff] 0.0
          %335 = vst [vmem:[#allocation2 + $0xf0] sm:$0xff] 0.0
          %336 = vst [vmem:[#allocation2 + $0xf8] sm:$0xff] 0.0
        $region40: #{_conv_bn_impl.1} parent=35 // pred_fallthru
          _
        %v337 = vld [vmem:[#allocation2] sm:$0xff]
        %v338 = vld [vmem:[#allocation2 + $0x8] sm:$0xff]
        %v339 = vld [vmem:[#allocation2 + $0x10] sm:$0xff]
        %v340 = vld [vmem:[#allocation2 + $0x18] sm:$0xff]
        %v341 = vld [vmem:[#allocation2 + $0x20] sm:$0xff]
        %v342 = vld [vmem:[#allocation2 + $0x28] sm:$0xff]
        %v343 = vld [vmem:[#allocation2 + $0x30] sm:$0xff]
        %v344 = vld [vmem:[#allocation2 + $0x38] sm:$0xff]
        %v345 = vld [vmem:[#allocation2 + $0x40] sm:$0xff]
        %v346 = vld [vmem:[#allocation2 + $0x48] sm:$0xff]
        %v347 = vld [vmem:[#allocation2 + $0x50] sm:$0xff]
        %v348 = vld [vmem:[#allocation2 + $0x58] sm:$0xff]
        %v349 = vld [vmem:[#allocation2 + $0x60] sm:$0xff]
        %v350 = vld [vmem:[#allocation2 + $0x68] sm:$0xff]
        %v351 = vld [vmem:[#allocation2 + $0x70] sm:$0xff]
        %v352 = vld [vmem:[#allocation2 + $0x78] sm:$0xff]
        %v353 = vld [vmem:[#allocation2 + $0x80] sm:$0xff]
        %v354 = vld [vmem:[#allocation2 + $0x88] sm:$0xff]
        %v355 = vld [vmem:[#allocation2 + $0x90] sm:$0xff]
        %v356 = vld [vmem:[#allocation2 + $0x98] sm:$0xff]
        %v357 = vld [vmem:[#allocation2 + $0xa0] sm:$0xff]
        %v358 = vld [vmem:[#allocation2 + $0xa8] sm:$0xff]
        %v359 = vld [vmem:[#allocation2 + $0xb0] sm:$0xff]
        %v360 = vld [vmem:[#allocation2 + $0xb8] sm:$0xff]
        %v361 = vld [vmem:[#allocation2 + $0xc0] sm:$0xff]
        %v362 = vld [vmem:[#allocation2 + $0xc8] sm:$0xff]
        %v363 = vld [vmem:[#allocation2 + $0xd0] sm:$0xff]
        %v364 = vld [vmem:[#allocation2 + $0xd8] sm:$0xff]
        %v365 = vld [vmem:[#allocation2 + $0xe0] sm:$0xff]
        %v366 = vld [vmem:[#allocation2 + $0xe8] sm:$0xff]
        %v367 = vld [vmem:[#allocation2 + $0xf0] sm:$0xff]
        %v368 = vld [vmem:[#allocation2 + $0xf8] sm:$0xff]
        %v369 = vld [vmem:[%s281] sm:$0xff]
        %v370 = vld [vmem:[%s281 + $0x8] sm:$0xff]
        %v371 = vld [vmem:[%s281 + $0x10] sm:$0xff]
        %v372 = vld [vmem:[%s281 + $0x18] sm:$0xff]
        %v373 = vld [vmem:[%s281 + $0x20] sm:$0xff]
        %v374 = vld [vmem:[%s281 + $0x28] sm:$0xff]
        %v375 = vld [vmem:[%s281 + $0x30] sm:$0xff]
        %v376 = vld [vmem:[%s281 + $0x38] sm:$0xff]
        %v377 = vld [vmem:[%s281 + $0x40] sm:$0xff]
        %v378 = vld [vmem:[%s281 + $0x48] sm:$0xff]
        %v379 = vld [vmem:[%s281 + $0x50] sm:$0xff]
        %v380 = vld [vmem:[%s281 + $0x58] sm:$0xff]
        %v381 = vld [vmem:[%s281 + $0x60] sm:$0xff]
        %v382 = vld [vmem:[%s281 + $0x68] sm:$0xff]
        %v383 = vld [vmem:[%s281 + $0x70] sm:$0xff]
        %v384 = vld [vmem:[%s281 + $0x78] sm:$0xff]
        %v385 = vld [vmem:[%s281 + $0x80] sm:$0xff]
        %v386 = vld [vmem:[%s281 + $0x88] sm:$0xff]
        %v387 = vld [vmem:[%s281 + $0x90] sm:$0xff]
        %v388 = vld [vmem:[%s281 + $0x98] sm:$0xff]
        %v389 = vld [vmem:[%s281 + $0xa0] sm:$0xff]
        %v390 = vld [vmem:[%s281 + $0xa8] sm:$0xff]
        %v391 = vld [vmem:[%s281 + $0xb0] sm:$0xff]
        %v392 = vld [vmem:[%s281 + $0xb8] sm:$0xff]
        %v393 = vld [vmem:[%s281 + $0xc0] sm:$0xff]
        %v394 = vld [vmem:[%s281 + $0xc8] sm:$0xff]
        %v395 = vld [vmem:[%s281 + $0xd0] sm:$0xff]
        %v396 = vld [vmem:[%s281 + $0xd8] sm:$0xff]
        %v397 = vld [vmem:[%s281 + $0xe0] sm:$0xff]
        %v398 = vld [vmem:[%s281 + $0xe8] sm:$0xff]
        %v399 = vld [vmem:[%s281 + $0xf0] sm:$0xff]
        %v400 = vld [vmem:[%s281 + $0xf8] sm:$0xff]
        %v401 = vld [vmem:[%s291] sm:$0xf]
        %v402 = vld [vmem:[%s291 + $0x4] sm:$0xf]
        %v403 = vld [vmem:[%s291 + $0x8] sm:$0xf]
        %v404 = vld [vmem:[%s291 + $0xc] sm:$0xf]
        %v405 = vld [vmem:[%s291 + $0x10] sm:$0xf]
        %v406 = vld [vmem:[%s291 + $0x14] sm:$0xf]
        %v407 = vld [vmem:[%s291 + $0x18] sm:$0xf]
        %v408 = vld [vmem:[%s291 + $0x1c] sm:$0xf]
        %v409 = vld [vmem:[%s291 + $0x20] sm:$0xf]
        %v410 = vld [vmem:[%s291 + $0x24] sm:$0xf]
        %v411 = vld [vmem:[%s291 + $0x28] sm:$0xf]
        %v412 = vld [vmem:[%s291 + $0x2c] sm:$0xf]
        %v413 = vld [vmem:[%s291 + $0x30] sm:$0xf]
        %v414 = vld [vmem:[%s291 + $0x34] sm:$0xf]
        %v415 = vld [vmem:[%s291 + $0x38] sm:$0xf]
        %v416 = vld [vmem:[%s291 + $0x3c] sm:$0xf]
        %v417 = vld [vmem:[%s291 + $0x40] sm:$0xf]
        %v418 = vld [vmem:[%s291 + $0x44] sm:$0xf]
        %v419 = vld [vmem:[%s291 + $0x48] sm:$0xf]
        %v420 = vld [vmem:[%s291 + $0x4c] sm:$0xf]
        %v421 = vld [vmem:[%s291 + $0x50] sm:$0xf]
        %v422 = vld [vmem:[%s291 + $0x54] sm:$0xf]
        %v423 = vld [vmem:[%s291 + $0x58] sm:$0xf]
        %v424 = vld [vmem:[%s291 + $0x5c] sm:$0xf]
        %v425 = vld [vmem:[%s291 + $0x60] sm:$0xf]
        %v426 = vld [vmem:[%s291 + $0x64] sm:$0xf]
        %v427 = vld [vmem:[%s291 + $0x68] sm:$0xf]
        %v428 = vld [vmem:[%s291 + $0x6c] sm:$0xf]
        %v429 = vld [vmem:[%s291 + $0x70] sm:$0xf]
        %v430 = vld [vmem:[%s291 + $0x74] sm:$0xf]
        %v431 = vld [vmem:[%s291 + $0x78] sm:$0xf]
        %v432 = vld [vmem:[%s291 + $0x7c] sm:$0xf]
        %v465 = vunpack.c.l.b16 %v369
        %v466 = vunpack.c.h.b16 %v369
        %v467 = vunpack.c.l.b16 %v370
        %v468 = vunpack.c.h.b16 %v370
        %v469 = vunpack.c.l.b16 %v371
        %v470 = vunpack.c.h.b16 %v371
        %v471 = vunpack.c.l.b16 %v372
        %v472 = vunpack.c.h.b16 %v372
        %v473 = vunpack.c.l.b16 %v373
        %v474 = vunpack.c.h.b16 %v373
        %v475 = vunpack.c.l.b16 %v374
        %v476 = vunpack.c.h.b16 %v374
        %v477 = vunpack.c.l.b16 %v375
        %v478 = vunpack.c.h.b16 %v375
        %v479 = vunpack.c.l.b16 %v376
        %v480 = vunpack.c.h.b16 %v376
        %v481 = vunpack.c.l.b16 %v377
        %v482 = vunpack.c.h.b16 %v377
        %v483 = vunpack.c.l.b16 %v378
        %v484 = vunpack.c.h.b16 %v378
        %v485 = vunpack.c.l.b16 %v379
        %v486 = vunpack.c.h.b16 %v379
        %v487 = vunpack.c.l.b16 %v380
        %v488 = vunpack.c.h.b16 %v380
        %v489 = vunpack.c.l.b16 %v381
        %v490 = vunpack.c.h.b16 %v381
        %v491 = vunpack.c.l.b16 %v382
        %v492 = vunpack.c.h.b16 %v382
        %v493 = vunpack.c.l.b16 %v383
        %v494 = vunpack.c.h.b16 %v383
        %v495 = vunpack.c.l.b16 %v384
        %v496 = vunpack.c.h.b16 %v384
        %v497 = vunpack.c.l.b16 %v385
        %v498 = vunpack.c.h.b16 %v385
        %v499 = vunpack.c.l.b16 %v386
        %v500 = vunpack.c.h.b16 %v386
        %v501 = vunpack.c.l.b16 %v387
        %v502 = vunpack.c.h.b16 %v387
        %v503 = vunpack.c.l.b16 %v388
        %v504 = vunpack.c.h.b16 %v388
        %v505 = vunpack.c.l.b16 %v389
        %v506 = vunpack.c.h.b16 %v389
        %v507 = vunpack.c.l.b16 %v390
        %v508 = vunpack.c.h.b16 %v390
        %v509 = vunpack.c.l.b16 %v391
        %v510 = vunpack.c.h.b16 %v391
        %v511 = vunpack.c.l.b16 %v392
        %v512 = vunpack.c.h.b16 %v392
        %v513 = vunpack.c.l.b16 %v393
        %v514 = vunpack.c.h.b16 %v393
        %v515 = vunpack.c.l.b16 %v394
        %v516 = vunpack.c.h.b16 %v394
        %v517 = vunpack.c.l.b16 %v395
        %v518 = vunpack.c.h.b16 %v395
        %v519 = vunpack.c.l.b16 %v396
        %v520 = vunpack.c.h.b16 %v396
        %v521 = vunpack.c.l.b16 %v397
        %v522 = vunpack.c.h.b16 %v397
        %v523 = vunpack.c.l.b16 %v398
        %v524 = vunpack.c.h.b16 %v398
        %v525 = vunpack.c.l.b16 %v399
        %v526 = vunpack.c.h.b16 %v399
        %v527 = vunpack.c.l.b16 %v400
        %v528 = vunpack.c.h.b16 %v400
        %v529 = vpack.c.b16 %v467, %v465
        %v530 = vpack.c.b16 %v468, %v466
        %v531 = vpack.c.b16 %v471, %v469
        %v532 = vpack.c.b16 %v472, %v470
        %v533 = vpack.c.b16 %v475, %v473
        %v534 = vpack.c.b16 %v476, %v474
        %v535 = vpack.c.b16 %v479, %v477
        %v536 = vpack.c.b16 %v480, %v478
        %v537 = vpack.c.b16 %v483, %v481
        %v538 = vpack.c.b16 %v484, %v482
        %v539 = vpack.c.b16 %v487, %v485
        %v540 = vpack.c.b16 %v488, %v486
        %v541 = vpack.c.b16 %v491, %v489
        %v542 = vpack.c.b16 %v492, %v490
        %v543 = vpack.c.b16 %v495, %v493
        %v544 = vpack.c.b16 %v496, %v494
        %v545 = vpack.c.b16 %v499, %v497
        %v546 = vpack.c.b16 %v500, %v498
        %v547 = vpack.c.b16 %v503, %v501
        %v548 = vpack.c.b16 %v504, %v502
        %v549 = vpack.c.b16 %v507, %v505
        %v550 = vpack.c.b16 %v508, %v506
        %v551 = vpack.c.b16 %v511, %v509
        %v552 = vpack.c.b16 %v512, %v510
        %v553 = vpack.c.b16 %v515, %v513
        %v554 = vpack.c.b16 %v516, %v514
        %v555 = vpack.c.b16 %v519, %v517
        %v556 = vpack.c.b16 %v520, %v518
        %v557 = vpack.c.b16 %v523, %v521
        %v558 = vpack.c.b16 %v524, %v522
        %v559 = vpack.c.b16 %v527, %v525
        %v560 = vpack.c.b16 %v528, %v526
        %v625 = vunpack.c.l.b16 %v401
        %v626 = vunpack.c.l.b16 %v402
        %v627 = vunpack.c.l.b16 %v403
        %v628 = vunpack.c.l.b16 %v404
        %v629 = vunpack.c.l.b16 %v405
        %v630 = vunpack.c.l.b16 %v406
        %v631 = vunpack.c.l.b16 %v407
        %v632 = vunpack.c.l.b16 %v408
        %v633 = vunpack.c.l.b16 %v409
        %v634 = vunpack.c.l.b16 %v410
        %v635 = vunpack.c.l.b16 %v411
        %v636 = vunpack.c.l.b16 %v412
        %v637 = vunpack.c.l.b16 %v413
        %v638 = vunpack.c.l.b16 %v414
        %v639 = vunpack.c.l.b16 %v415
        %v640 = vunpack.c.l.b16 %v416
        %v641 = vunpack.c.l.b16 %v417
        %v642 = vunpack.c.l.b16 %v418
        %v643 = vunpack.c.l.b16 %v419
        %v644 = vunpack.c.l.b16 %v420
        %v645 = vunpack.c.l.b16 %v421
        %v646 = vunpack.c.l.b16 %v422
        %v647 = vunpack.c.l.b16 %v423
        %v648 = vunpack.c.l.b16 %v424
        %v649 = vunpack.c.l.b16 %v425
        %v650 = vunpack.c.l.b16 %v426
        %v651 = vunpack.c.l.b16 %v427
        %v652 = vunpack.c.l.b16 %v428
        %v653 = vunpack.c.l.b16 %v429
        %v654 = vunpack.c.l.b16 %v430
        %v655 = vunpack.c.l.b16 %v431
        %v656 = vunpack.c.l.b16 %v432
        %v657 = vpack.c.b16 %v626, %v625
        %v658 = vpack.c.b16 %v628, %v627
        %v659 = vpack.c.b16 %v630, %v629
        %v660 = vpack.c.b16 %v632, %v631
        %v661 = vpack.c.b16 %v634, %v633
        %v662 = vpack.c.b16 %v636, %v635
        %v663 = vpack.c.b16 %v638, %v637
        %v664 = vpack.c.b16 %v640, %v639
        %v665 = vpack.c.b16 %v642, %v641
        %v666 = vpack.c.b16 %v644, %v643
        %v667 = vpack.c.b16 %v646, %v645
        %v668 = vpack.c.b16 %v648, %v647
        %v669 = vpack.c.b16 %v650, %v649
        %v670 = vpack.c.b16 %v652, %v651
        %v671 = vpack.c.b16 %v654, %v653
        %v672 = vpack.c.b16 %v656, %v655
        %689 = vmatprep.subr.bf16.mxu0 0
        %690 = vmatpush1.bf16.msra.mxu0 %v657
        %691 = vmatprep.subr.bf16.mxu0 0
        %692 = vmatpush1.bf16.msra.mxu0 %v658
        %693 = vmatprep.subr.bf16.mxu0 0
        %694 = vmatpush1.bf16.msra.mxu0 %v659
        %695 = vmatprep.subr.bf16.mxu0 0
        %696 = vmatpush1.bf16.msra.mxu0 %v660
        %697 = vmatprep.subr.bf16.mxu0 0
        %698 = vmatpush1.bf16.msra.mxu0 %v661
        %699 = vmatprep.subr.bf16.mxu0 0
        %700 = vmatpush1.bf16.msra.mxu0 %v662
        %701 = vmatprep.subr.bf16.mxu0 0
        %702 = vmatpush1.bf16.msra.mxu0 %v663
        %703 = vmatprep.subr.bf16.mxu0 0
        %704 = vmatpush1.bf16.msra.mxu0 %v664
        %705 = vmatprep.subr.bf16.mxu0 0
        %706 = vmatpush1.bf16.msra.mxu0 %v665
        %707 = vmatprep.subr.bf16.mxu0 0
        %708 = vmatpush1.bf16.msra.mxu0 %v666
        %709 = vmatprep.subr.bf16.mxu0 0
        %710 = vmatpush1.bf16.msra.mxu0 %v667
        %711 = vmatprep.subr.bf16.mxu0 0
        %712 = vmatpush1.bf16.msra.mxu0 %v668
        %713 = vmatprep.subr.bf16.mxu0 0
        %714 = vmatpush1.bf16.msra.mxu0 %v669
        %715 = vmatprep.subr.bf16.mxu0 0
        %716 = vmatpush1.bf16.msra.mxu0 %v670
        %717 = vmatprep.subr.bf16.mxu0 0
        %718 = vmatpush1.bf16.msra.mxu0 %v671
        %719 = vmatprep.subr.bf16.mxu0 0
        %720 = vmatpush1.bf16.msra.mxu0 %v672
        %721 = vmatprep.mubr.bf16.mxu0 %v530
        %722 = vmatmul.mubr.bf16.gmra.mrb[0].mxu0 %v529
        %v723 = vpop.f32.mrb[0].mxu0
        %v724 = vadd.f32 0.0, %v723
        %v725 = vpop.f32.mrb[0].mxu0
        %v726 = vpop.f32.mrb[0].mxu0
        %v727 = vadd.f32 0.0, %v726
        %v728 = vpop.f32.mrb[0].mxu0
        %729 = vmatprep.mubr.bf16.mxu0 %v532
        %730 = vmatmul.mubr.bf16.gmra.mrb[0].mxu0 %v531
        %v731 = vpop.f32.mrb[0].mxu0
        %v732 = vadd.f32 0.0, %v731
        %v733 = vpop.f32.mrb[0].mxu0
        %v734 = vpop.f32.mrb[0].mxu0
        %v735 = vadd.f32 0.0, %v734
        %v736 = vpop.f32.mrb[0].mxu0
        %737 = vmatprep.mubr.bf16.mxu0 %v534
        %738 = vmatmul.mubr.bf16.gmra.mrb[0].mxu0 %v533
        %v739 = vpop.f32.mrb[0].mxu0
        %v740 = vadd.f32 0.0, %v739
        %v741 = vpop.f32.mrb[0].mxu0
        %v742 = vpop.f32.mrb[0].mxu0
        %v743 = vadd.f32 0.0, %v742
        %v744 = vpop.f32.mrb[0].mxu0
        %745 = vmatprep.mubr.bf16.mxu0 %v536
        %746 = vmatmul.mubr.bf16.gmra.mrb[0].mxu0 %v535
        %v747 = vpop.f32.mrb[0].mxu0
        %v748 = vadd.f32 0.0, %v747
        %v749 = vpop.f32.mrb[0].mxu0
        %v750 = vpop.f32.mrb[0].mxu0
        %v751 = vadd.f32 0.0, %v750
        %v752 = vpop.f32.mrb[0].mxu0
        %753 = vmatprep.mubr.bf16.mxu0 %v538
        %754 = vmatmul.mubr.bf16.gmra.mrb[0].mxu0 %v537
        %v755 = vpop.f32.mrb[0].mxu0
        %v756 = vadd.f32 0.0, %v755
        %v757 = vpop.f32.mrb[0].mxu0
        %v758 = vpop.f32.mrb[0].mxu0
        %v759 = vadd.f32 0.0, %v758
        %v760 = vpop.f32.mrb[0].mxu0
        %761 = vmatprep.mubr.bf16.mxu0 %v540
        %762 = vmatmul.mubr.bf16.gmra.mrb[0].mxu0 %v539
        %v763 = vpop.f32.mrb[0].mxu0
        %v764 = vadd.f32 0.0, %v763
        %v765 = vpop.f32.mrb[0].mxu0
        %v766 = vpop.f32.mrb[0].mxu0
        %v767 = vadd.f32 0.0, %v766
        %v768 = vpop.f32.mrb[0].mxu0
        %769 = vmatprep.mubr.bf16.mxu0 %v542
        %770 = vmatmul.mubr.bf16.gmra.mrb[0].mxu0 %v541
        %v771 = vpop.f32.mrb[0].mxu0
        %v772 = vadd.f32 0.0, %v771
        %v773 = vpop.f32.mrb[0].mxu0
        %v774 = vpop.f32.mrb[0].mxu0
        %v775 = vadd.f32 0.0, %v774
        %v776 = vpop.f32.mrb[0].mxu0
        %777 = vmatprep.mubr.bf16.mxu0 %v544
        %778 = vmatmul.mubr.bf16.gmra.mrb[0].mxu0 %v543
        %v779 = vpop.f32.mrb[0].mxu0
        %v780 = vadd.f32 0.0, %v779
        %v781 = vpop.f32.mrb[0].mxu0
        %v782 = vpop.f32.mrb[0].mxu0
        %v783 = vadd.f32 0.0, %v782
        %v784 = vpop.f32.mrb[0].mxu0
        %785 = vmatprep.mubr.bf16.mxu0 %v546
        %786 = vmatmul.mubr.bf16.gmra.mrb[0].mxu0 %v545
        %v787 = vpop.f32.mrb[0].mxu0
        %v788 = vadd.f32 0.0, %v787
        %v789 = vpop.f32.mrb[0].mxu0
        %v790 = vpop.f32.mrb[0].mxu0
        %v791 = vadd.f32 0.0, %v790
        %v792 = vpop.f32.mrb[0].mxu0
        %793 = vmatprep.mubr.bf16.mxu0 %v548
        %794 = vmatmul.mubr.bf16.gmra.mrb[0].mxu0 %v547
        %v795 = vpop.f32.mrb[0].mxu0
        %v796 = vadd.f32 0.0, %v795
        %v797 = vpop.f32.mrb[0].mxu0
        %v798 = vpop.f32.mrb[0].mxu0
        %v799 = vadd.f32 0.0, %v798
        %v800 = vpop.f32.mrb[0].mxu0
        %801 = vmatprep.mubr.bf16.mxu0 %v550
        %802 = vmatmul.mubr.bf16.gmra.mrb[0].mxu0 %v549
        %v803 = vpop.f32.mrb[0].mxu0
        %v804 = vadd.f32 0.0, %v803
        %v805 = vpop.f32.mrb[0].mxu0
        %v806 = vpop.f32.mrb[0].mxu0
        %v807 = vadd.f32 0.0, %v806
        %v808 = vpop.f32.mrb[0].mxu0
        %809 = vmatprep.mubr.bf16.mxu0 %v552
        %810 = vmatmul.mubr.bf16.gmra.mrb[0].mxu0 %v551
        %v811 = vpop.f32.mrb[0].mxu0
        %v812 = vadd.f32 0.0, %v811
        %v813 = vpop.f32.mrb[0].mxu0
        %v814 = vpop.f32.mrb[0].mxu0
        %v815 = vadd.f32 0.0, %v814
        %v816 = vpop.f32.mrb[0].mxu0
        %817 = vmatprep.mubr.bf16.mxu0 %v554
        %818 = vmatmul.mubr.bf16.gmra.mrb[0].mxu0 %v553
        %v819 = vpop.f32.mrb[0].mxu0
        %v820 = vadd.f32 0.0, %v819
        %v821 = vpop.f32.mrb[0].mxu0
        %v822 = vpop.f32.mrb[0].mxu0
        %v823 = vadd.f32 0.0, %v822
        %v824 = vpop.f32.mrb[0].mxu0
        %825 = vmatprep.mubr.bf16.mxu0 %v556
        %826 = vmatmul.mubr.bf16.gmra.mrb[0].mxu0 %v555
        %v827 = vpop.f32.mrb[0].mxu0
        %v828 = vadd.f32 0.0, %v827
        %v829 = vpop.f32.mrb[0].mxu0
        %v830 = vpop.f32.mrb[0].mxu0
        %v831 = vadd.f32 0.0, %v830
        %v832 = vpop.f32.mrb[0].mxu0
        %833 = vmatprep.mubr.bf16.mxu0 %v558
        %834 = vmatmul.mubr.bf16.gmra.mrb[0].mxu0 %v557
        %v835 = vpop.f32.mrb[0].mxu0
        %v836 = vadd.f32 0.0, %v835
        %v837 = vpop.f32.mrb[0].mxu0
        %v838 = vpop.f32.mrb[0].mxu0
        %v839 = vadd.f32 0.0, %v838
        %v840 = vpop.f32.mrb[0].mxu0
        %841 = vmatprep.mubr.bf16.mxu0 %v560
        %842 = vmatmul.mubr.bf16.gmra.mrb[0].mxu0 %v559
        %v843 = vpop.f32.mrb[0].mxu0
        %v844 = vadd.f32 0.0, %v843
        %v845 = vpop.f32.mrb[0].mxu0
        %v846 = vpop.f32.mrb[0].mxu0
        %v847 = vadd.f32 0.0, %v846
        %v848 = vpop.f32.mrb[0].mxu0
        %849 = vdwg.mxu0
        %v850 = vadd.f32 %v337, %v724
        %v851 = vadd.f32 %v338, %v727
        %v852 = vadd.f32 %v339, %v732
        %v853 = vadd.f32 %v340, %v735
        %v854 = vadd.f32 %v341, %v740
        %v855 = vadd.f32 %v342, %v743
        %v856 = vadd.f32 %v343, %v748
        %v857 = vadd.f32 %v344, %v751
        %v858 = vadd.f32 %v345, %v756
        %v859 = vadd.f32 %v346, %v759
        %v860 = vadd.f32 %v347, %v764
        %v861 = vadd.f32 %v348, %v767
        %v862 = vadd.f32 %v349, %v772
        %v863 = vadd.f32 %v350, %v775
        %v864 = vadd.f32 %v351, %v780
        %v865 = vadd.f32 %v352, %v783
        %v866 = vadd.f32 %v353, %v788
        %v867 = vadd.f32 %v354, %v791
        %v868 = vadd.f32 %v355, %v796
        %v869 = vadd.f32 %v356, %v799
        %v870 = vadd.f32 %v357, %v804
        %v871 = vadd.f32 %v358, %v807
        %v872 = vadd.f32 %v359, %v812
        %v873 = vadd.f32 %v360, %v815
        %v874 = vadd.f32 %v361, %v820
        %v875 = vadd.f32 %v362, %v823
        %v876 = vadd.f32 %v363, %v828
        %v877 = vadd.f32 %v364, %v831
        %v878 = vadd.f32 %v365, %v836
        %v879 = vadd.f32 %v366, %v839
        %v880 = vadd.f32 %v367, %v844
        %v881 = vadd.f32 %v368, %v847
        %882 = vst [vmem:[#allocation2] sm:$0xff] %v850
        %883 = vst [vmem:[#allocation2 + $0x8] sm:$0xff] %v851
        %884 = vst [vmem:[#allocation2 + $0x10] sm:$0xff] %v852
        %885 = vst [vmem:[#allocation2 + $0x18] sm:$0xff] %v853
        %886 = vst [vmem:[#allocation2 + $0x20] sm:$0xff] %v854
        %887 = vst [vmem:[#allocation2 + $0x28] sm:$0xff] %v855
        %888 = vst [vmem:[#allocation2 + $0x30] sm:$0xff] %v856
        %889 = vst [vmem:[#allocation2 + $0x38] sm:$0xff] %v857
        %890 = vst [vmem:[#allocation2 + $0x40] sm:$0xff] %v858
        %891 = vst [vmem:[#allocation2 + $0x48] sm:$0xff] %v859
        %892 = vst [vmem:[#allocation2 + $0x50] sm:$0xff] %v860
        %893 = vst [vmem:[#allocation2 + $0x58] sm:$0xff] %v861
        %894 = vst [vmem:[#allocation2 + $0x60] sm:$0xff] %v862
        %895 = vst [vmem:[#allocation2 + $0x68] sm:$0xff] %v863
        %896 = vst [vmem:[#allocation2 + $0x70] sm:$0xff] %v864
        %897 = vst [vmem:[#allocation2 + $0x78] sm:$0xff] %v865
        %898 = vst [vmem:[#allocation2 + $0x80] sm:$0xff] %v866
        %899 = vst [vmem:[#allocation2 + $0x88] sm:$0xff] %v867
        %900 = vst [vmem:[#allocation2 + $0x90] sm:$0xff] %v868
        %901 = vst [vmem:[#allocation2 + $0x98] sm:$0xff] %v869
        %902 = vst [vmem:[#allocation2 + $0xa0] sm:$0xff] %v870
        %903 = vst [vmem:[#allocation2 + $0xa8] sm:$0xff] %v871
        %904 = vst [vmem:[#allocation2 + $0xb0] sm:$0xff] %v872
        %905 = vst [vmem:[#allocation2 + $0xb8] sm:$0xff] %v873
        %906 = vst [vmem:[#allocation2 + $0xc0] sm:$0xff] %v874
        %907 = vst [vmem:[#allocation2 + $0xc8] sm:$0xff] %v875
        %908 = vst [vmem:[#allocation2 + $0xd0] sm:$0xff] %v876
        %909 = vst [vmem:[#allocation2 + $0xd8] sm:$0xff] %v877
        %910 = vst [vmem:[#allocation2 + $0xe0] sm:$0xff] %v878
        %911 = vst [vmem:[#allocation2 + $0xe8] sm:$0xff] %v879
        %912 = vst [vmem:[#allocation2 + $0xf0] sm:$0xff] %v880
        %913 = vst [vmem:[#allocation2 + $0xf8] sm:$0xff] %v881
        // Predicated region
        $region41: #{_conv_bn_impl.1} parent=35 // pred_check
          %p914 = pneg %p301
        $region42: #{_conv_bn_impl.1} parent=35 // pred_check_branch
          %916 = sbr.rel (%p914) target = $region44
        $region43: #{_conv_bn_impl.1} parent=35 // pred_region
          %v917 = vld [vmem:[#allocation2] sm:$0xff]
          %v918 = vld [vmem:[#allocation2 + $0x8] sm:$0xff]
          %v919 = vld [vmem:[#allocation2 + $0x10] sm:$0xff]
          %v920 = vld [vmem:[#allocation2 + $0x18] sm:$0xff]
          %v921 = vld [vmem:[#allocation2 + $0x20] sm:$0xff]
          %v922 = vld [vmem:[#allocation2 + $0x28] sm:$0xff]
          %v923 = vld [vmem:[#allocation2 + $0x30] sm:$0xff]
          %v924 = vld [vmem:[#allocation2 + $0x38] sm:$0xff]
          %v925 = vld [vmem:[#allocation2 + $0x40] sm:$0xff]
          %v926 = vld [vmem:[#allocation2 + $0x48] sm:$0xff]
          %v927 = vld [vmem:[#allocation2 + $0x50] sm:$0xff]
          %v928 = vld [vmem:[#allocation2 + $0x58] sm:$0xff]
          %v929 = vld [vmem:[#allocation2 + $0x60] sm:$0xff]
          %v930 = vld [vmem:[#allocation2 + $0x68] sm:$0xff]
          %v931 = vld [vmem:[#allocation2 + $0x70] sm:$0xff]
          %v932 = vld [vmem:[#allocation2 + $0x78] sm:$0xff]
          %v933 = vld [vmem:[#allocation2 + $0x80] sm:$0xff]
          %v934 = vld [vmem:[#allocation2 + $0x88] sm:$0xff]
          %v935 = vld [vmem:[#allocation2 + $0x90] sm:$0xff]
          %v936 = vld [vmem:[#allocation2 + $0x98] sm:$0xff]
          %v937 = vld [vmem:[#allocation2 + $0xa0] sm:$0xff]
          %v938 = vld [vmem:[#allocation2 + $0xa8] sm:$0xff]
          %v939 = vld [vmem:[#allocation2 + $0xb0] sm:$0xff]
          %v940 = vld [vmem:[#allocation2 + $0xb8] sm:$0xff]
          %v941 = vld [vmem:[#allocation2 + $0xc0] sm:$0xff]
          %v942 = vld [vmem:[#allocation2 + $0xc8] sm:$0xff]
          %v943 = vld [vmem:[#allocation2 + $0xd0] sm:$0xff]
          %v944 = vld [vmem:[#allocation2 + $0xd8] sm:$0xff]
          %v945 = vld [vmem:[#allocation2 + $0xe0] sm:$0xff]
          %v946 = vld [vmem:[#allocation2 + $0xe8] sm:$0xff]
          %v947 = vld [vmem:[#allocation2 + $0xf0] sm:$0xff]
          %v948 = vld [vmem:[#allocation2 + $0xf8] sm:$0xff]
          %v949 = vld [vmem:[%s295] sm:$0x1]
          %v951 = vlaneseq
          %v952 = vshrl.u32 %v951, 7
          %v953 = vsub.s32 0, %v952
          %v954 = vrot.slane %v949, %v953
          %v956 = vmul.f32 %v917, %v954
          %v957 = vmul.f32 %v918, %v954
          %v958 = vmul.f32 %v919, %v954
          %v959 = vmul.f32 %v920, %v954
          %v960 = vmul.f32 %v921, %v954
          %v961 = vmul.f32 %v922, %v954
          %v962 = vmul.f32 %v923, %v954
          %v963 = vmul.f32 %v924, %v954
          %v964 = vmul.f32 %v925, %v954
          %v965 = vmul.f32 %v926, %v954
          %v966 = vmul.f32 %v927, %v954
          %v967 = vmul.f32 %v928, %v954
          %v968 = vmul.f32 %v929, %v954
          %v969 = vmul.f32 %v930, %v954
          %v970 = vmul.f32 %v931, %v954
          %v971 = vmul.f32 %v932, %v954
          %v972 = vmul.f32 %v933, %v954
          %v973 = vmul.f32 %v934, %v954
          %v974 = vmul.f32 %v935, %v954
          %v975 = vmul.f32 %v936, %v954
          %v976 = vmul.f32 %v937, %v954
          %v977 = vmul.f32 %v938, %v954
          %v978 = vmul.f32 %v939, %v954
          %v979 = vmul.f32 %v940, %v954
          %v980 = vmul.f32 %v941, %v954
          %v981 = vmul.f32 %v942, %v954
          %v982 = vmul.f32 %v943, %v954
          %v983 = vmul.f32 %v944, %v954
          %v984 = vmul.f32 %v945, %v954
          %v985 = vmul.f32 %v946, %v954
          %v986 = vmul.f32 %v947, %v954
          %v987 = vmul.f32 %v948, %v954
          %v988 = vld [vmem:[%s298] sm:$0x1]
          %v990 = vlaneseq
          %v991 = vshrl.u32 %v990, 7
          %v992 = vsub.s32 0, %v991
          %v993 = vrot.slane %v988, %v992
          %v995 = vadd.f32 %v956, %v993
          %v996 = vadd.f32 %v957, %v993
          %v997 = vadd.f32 %v958, %v993
          %v998 = vadd.f32 %v959, %v993
          %v999 = vadd.f32 %v960, %v993
          %v1000 = vadd.f32 %v961, %v993
          %v1001 = vadd.f32 %v962, %v993
          %v1002 = vadd.f32 %v963, %v993
          %v1003 = vadd.f32 %v964, %v993
          %v1004 = vadd.f32 %v965, %v993
          %v1005 = vadd.f32 %v966, %v993
          %v1006 = vadd.f32 %v967, %v993
          %v1007 = vadd.f32 %v968, %v993
          %v1008 = vadd.f32 %v969, %v993
          %v1009 = vadd.f32 %v970, %v993
          %v1010 = vadd.f32 %v971, %v993
          %v1011 = vadd.f32 %v972, %v993
          %v1012 = vadd.f32 %v973, %v993
          %v1013 = vadd.f32 %v974, %v993
          %v1014 = vadd.f32 %v975, %v993
          %v1015 = vadd.f32 %v976, %v993
          %v1016 = vadd.f32 %v977, %v993
          %v1017 = vadd.f32 %v978, %v993
          %v1018 = vadd.f32 %v979, %v993
          %v1019 = vadd.f32 %v980, %v993
          %v1020 = vadd.f32 %v981, %v993
          %v1021 = vadd.f32 %v982, %v993
          %v1022 = vadd.f32 %v983, %v993
          %v1023 = vadd.f32 %v984, %v993
          %v1024 = vadd.f32 %v985, %v993
          %v1025 = vadd.f32 %v986, %v993
          %v1026 = vadd.f32 %v987, %v993
          %v1027 = vmax.f32 %v995, 0.0
          %v1028 = vmax.f32 %v996, 0.0
          %v1029 = vmax.f32 %v997, 0.0
          %v1030 = vmax.f32 %v998, 0.0
          %v1031 = vmax.f32 %v999, 0.0
          %v1032 = vmax.f32 %v1000, 0.0
          %v1033 = vmax.f32 %v1001, 0.0
          %v1034 = vmax.f32 %v1002, 0.0
          %v1035 = vmax.f32 %v1003, 0.0
          %v1036 = vmax.f32 %v1004, 0.0
          %v1037 = vmax.f32 %v1005, 0.0
          %v1038 = vmax.f32 %v1006, 0.0
          %v1039 = vmax.f32 %v1007, 0.0
          %v1040 = vmax.f32 %v1008, 0.0
          %v1041 = vmax.f32 %v1009, 0.0
          %v1042 = vmax.f32 %v1010, 0.0
          %v1043 = vmax.f32 %v1011, 0.0
          %v1044 = vmax.f32 %v1012, 0.0
          %v1045 = vmax.f32 %v1013, 0.0
          %v1046 = vmax.f32 %v1014, 0.0
          %v1047 = vmax.f32 %v1015, 0.0
          %v1048 = vmax.f32 %v1016, 0.0
          %v1049 = vmax.f32 %v1017, 0.0
          %v1050 = vmax.f32 %v1018, 0.0
          %v1051 = vmax.f32 %v1019, 0.0
          %v1052 = vmax.f32 %v1020, 0.0
          %v1053 = vmax.f32 %v1021, 0.0
          %v1054 = vmax.f32 %v1022, 0.0
          %v1055 = vmax.f32 %v1023, 0.0
          %v1056 = vmax.f32 %v1024, 0.0
          %v1057 = vmax.f32 %v1025, 0.0
          %v1058 = vmax.f32 %v1026, 0.0
          %1059 = vst [vmem:[%s271] sm:$0xff] %v1027
          %1060 = vst [vmem:[%s271 + $0x8] sm:$0xff] %v1028
          %1061 = vst [vmem:[%s271 + $0x10] sm:$0xff] %v1029
          %1062 = vst [vmem:[%s271 + $0x18] sm:$0xff] %v1030
          %1063 = vst [vmem:[%s271 + $0x20] sm:$0xff] %v1031
          %1064 = vst [vmem:[%s271 + $0x28] sm:$0xff] %v1032
          %1065 = vst [vmem:[%s271 + $0x30] sm:$0xff] %v1033
          %1066 = vst [vmem:[%s271 + $0x38] sm:$0xff] %v1034
          %1067 = vst [vmem:[%s271 + $0x40] sm:$0xff] %v1035
          %1068 = vst [vmem:[%s271 + $0x48] sm:$0xff] %v1036
          %1069 = vst [vmem:[%s271 + $0x50] sm:$0xff] %v1037
          %1070 = vst [vmem:[%s271 + $0x58] sm:$0xff] %v1038
          %1071 = vst [vmem:[%s271 + $0x60] sm:$0xff] %v1039
          %1072 = vst [vmem:[%s271 + $0x68] sm:$0xff] %v1040
          %1073 = vst [vmem:[%s271 + $0x70] sm:$0xff] %v1041
          %1074 = vst [vmem:[%s271 + $0x78] sm:$0xff] %v1042
          %1075 = vst [vmem:[%s271 + $0x80] sm:$0xff] %v1043
          %1076 = vst [vmem:[%s271 + $0x88] sm:$0xff] %v1044
          %1077 = vst [vmem:[%s271 + $0x90] sm:$0xff] %v1045
          %1078 = vst [vmem:[%s271 + $0x98] sm:$0xff] %v1046
          %1079 = vst [vmem:[%s271 + $0xa0] sm:$0xff] %v1047
          %1080 = vst [vmem:[%s271 + $0xa8] sm:$0xff] %v1048
          %1081 = vst [vmem:[%s271 + $0xb0] sm:$0xff] %v1049
          %1082 = vst [vmem:[%s271 + $0xb8] sm:$0xff] %v1050
          %1083 = vst [vmem:[%s271 + $0xc0] sm:$0xff] %v1051
          %1084 = vst [vmem:[%s271 + $0xc8] sm:$0xff] %v1052
          %1085 = vst [vmem:[%s271 + $0xd0] sm:$0xff] %v1053
          %1086 = vst [vmem:[%s271 + $0xd8] sm:$0xff] %v1054
          %1087 = vst [vmem:[%s271 + $0xe0] sm:$0xff] %v1055
          %1088 = vst [vmem:[%s271 + $0xe8] sm:$0xff] %v1056
          %1089 = vst [vmem:[%s271 + $0xf0] sm:$0xff] %v1057
          %1090 = vst [vmem:[%s271 + $0xf8] sm:$0xff] %v1058
        $region44: #{_conv_bn_impl.1} parent=35 // pred_fallthru
          _
        %s1091 = sand.u32 %s155, 1
        %s1092 = scalar_lea.sflag [#allocation4], %s1091
        %s1093 = sand.u32 %s155, 1
        %s1094 = smul.addr %s1093, 256
        %s1095 = scalar_lea.vmem [#allocation3], %s1094
        // Predicated region
        $region45: #{_conv_bn_impl.1} parent=35 // pred_check
          %p1096 = pneg %p165
        $region46: #{_conv_bn_impl.1} parent=35 // pred_check_branch
          %1098 = sbr.rel (%p1096) target = $region48
        $region47: #{_conv_bn_impl.1} parent=35 // pred_region
          %s1099 = smul.u32 32, %s23
          %s1101 = ssub.s32 4096, 4096
          %1102 = vsyncadd %s1092, %s1101
          %s1103 = sadd.s32 %s24, %s1099
          %s1104 = smul.addr %s1103, 128
          %s1105 = scalar_lea.hbm %s4, %s1104
          %s1106 = sshll.u32 %s1095, 4
          %s1107 = int_to_ptr.vmem [resolvable:$true] %s1106
          %1112 = dma.vmem_to_hbm [thread:$0]  %s1107, 4096, %s1105, %s1092, 128, 128, 8
        $region48: #{_conv_bn_impl.1} parent=35 // pred_fallthru
          _
      $region36: #{_conv_bn_impl.1} parent=5 // pred_fallthru
        _
      %p1113 = scmp.le.s32.totalorder 2, %s13
      // Predicated region
      $region49: #{_conv_bn_impl.1} parent=5 // pred_check
        %p1114 = pneg %p1113
      $region50: #{_conv_bn_impl.1} parent=5 // pred_check_branch
        %1116 = sbr.rel (%p1114) target = $region52
      $region51: #{_conv_bn_impl.1} parent=5 // pred_region
        %s1117 = ssub.s32 %s13, 2
        // Predicated region
        $region53: #{_conv_bn_impl.1} parent=51 // pred_check
          %p1118 = pneg %p171
        $region54: #{_conv_bn_impl.1} parent=51 // pred_check_branch
          %1120 = sbr.rel (%p1118) target = $region56
        $region55: #{_conv_bn_impl.1} parent=51 // pred_region
          %s1121 = sand.u32 %s156, 1
          %s1122 = scalar_lea.sflag [#allocation4], %s1121
          %s1123 = sand.u32 %s156, 1
          %s1124 = smul.addr %s1123, 256
          %s1125 = scalar_lea.vmem [#allocation3], %s1124
          %1126 = dma.done %s1122, 4096
        $region56: #{_conv_bn_impl.1} parent=51 // pred_fallthru
          _
      $region52: #{_conv_bn_impl.1} parent=5 // pred_fallthru
        _
    $region6: #{_conv_bn_impl.1} parent=1 // loop_footer
      %s17 = sadd.s32 1, %s13
    $region7: #{_conv_bn_impl.1} parent=1 // loop_footer_branch
      %12 = sbr.rel target = $region3
    $region8: #{_conv_bn_impl.1} parent=1 // loop_exit
      _
    %1127 = vsyncpa [#allocation4], 1
    %s1128 = scalar_lea.sflag [#allocation4], 1
    %1129 = vsyncpa %s1128, 1

</llo_original>
